<compile_context>
chip_gen: v7x
topology: tpu7x:2x2x1
jax: 0.10.0
libtpu: 0.0.40
codegen_flags: <defaults>
</compile_context>

<pallas_src>
import jax
import jax.numpy as jnp
from jax.experimental import pallas as pl
from jax.experimental.pallas import tpu as pltpu

NEG_SLOPE = 0.01   # torch.nn.LeakyReLU default negative_slope
_LANE = 128


def _leaky_relu(x):
    return jnp.where(x >= 0, x, NEG_SLOPE * x)


def _round_up(n, m):
    return (n + m - 1) // m * m


def feedforward_kernel(x_ref, w1_ref, b1_ref, w2_ref, b2_ref, w3_ref, b3_ref,
                       out_ref):
    # Cast x to bf16 in-kernel (VPU, hidden under the DMA pipeline) so the
    # wrapper never makes a separate HBM pass over x.
    x = x_ref[...].astype(jnp.bfloat16)

    # fc1: bf16 MXU matmul with f32 accumulation; bias + LeakyReLU in f32.
    h = jnp.dot(x, w1_ref[...], preferred_element_type=jnp.float32)
    h = _leaky_relu(h + b1_ref[...])

    # fc2: same pattern.
    h2 = jnp.dot(h.astype(jnp.bfloat16), w2_ref[...],
                 preferred_element_type=jnp.float32)
    h2 = _leaky_relu(h2 + b2_ref[...])

    # fc3 (out_features == 1), computed transposed so the result is a
    # lane-dense (1, TILE_B) row rather than a (TILE_B, 1) column:
    #   logits[0, j] = sum_k w3[0, k] * h2[j, k]
    logits = jax.lax.dot_general(
        w3_ref[...], h2.astype(jnp.bfloat16),
        dimension_numbers=(((1,), (1,)), ((), ())),
        preferred_element_type=jnp.float32)            # (1, TILE_B), f32
    logits = logits + b3_ref[0]                         # scalar bias from SMEM
    out = jax.nn.sigmoid(logits)                        # EUP, f32

    out_ref[...] = out.reshape(out_ref.shape).astype(out_ref.dtype)


def _vmem_limit_bytes():
    """Per-generation scoped-VMEM budget: ~70% of physical, capped at 96 MiB.

    v7x: 64 MiB physical -> ~45 MiB; v5e/v6e: 128 MiB -> ~90 MiB."""
    try:
        cap = pltpu.get_tpu_info().vmem_capacity_bytes
    except Exception:
        cap = 64 * 1024 * 1024   # assume the smallest (v7x) if the query fails
    return min(int(cap * 0.70), 96 * 1024 * 1024)


def _pick_batch_tile(B, in_features, hidden, h2dim, tile_b, vmem_limit):
    """Batch tile (multiple of 128): big to amortize per-step overhead, but
    >=2 grid steps when B allows (v7x megacore) and within the VMEM budget."""
    tile_b = max(_LANE, _round_up(tile_b, _LANE))
    b_blocks = pl.cdiv(B, _LANE)
    tb_blocks = min(tile_b // _LANE, b_blocks)

    # v7x megacore: keep >= 2 grid steps whenever the batch spans >1 tile of
    # 128 rows, so the "parallel" axis can be sharded across both TensorCores.
    if b_blocks >= 2:
        tb_blocks = min(tb_blocks, max(1, (b_blocks + 1) // 2))

    # VMEM accounting (lane dims padded to 128 in VMEM):
    #   double-buffered f32 x tile, its bf16 cast, f32+bf16 h and h2
    #   temporaries, double-buffered (1, tb) output row.
    lanes_in = _round_up(in_features, _LANE)
    lanes_h1 = _round_up(hidden, _LANE)
    lanes_h2 = _round_up(h2dim, _LANE)
    per_row = (2 * 4 * lanes_in       # x tile (f32, double-buffered)
               + 2 * lanes_in         # bf16 cast of x
               + 6 * lanes_h1         # h in f32 + bf16
               + 6 * lanes_h2         # h2 in f32 + bf16
               + 2 * 4)               # lane-dense output row (double-buffered)
    weights = (2 * 2 * (in_features * hidden + hidden * h2dim + h2dim)
               + 2 * 4 * (hidden + h2dim))          # resident weights/biases
    budget = vmem_limit - weights - (2 << 20)        # 2 MiB slack
    max_blocks = max(1, budget // (per_row * _LANE))
    tb_blocks = max(1, min(tb_blocks, max_blocks))
    return tb_blocks * _LANE


def feedforward(x, w1, b1, w2, b2, w3, b3, *, tile_b=1024):
    """x: (B, input_size) f32 -> (B, 1) f32.

    Weights stored as (in_features, out_features); biases as (1, out)."""
    B, in_features = x.shape
    hidden = w1.shape[1]
    h2dim = w2.shape[1]

    vmem_limit = _vmem_limit_bytes()
    tb = _pick_batch_tile(B, in_features, hidden, h2dim, tile_b, vmem_limit)
    num_tiles = pl.cdiv(B, tb)

    # Tiny batches (< one 128-row tile) are padded so the x block never
    # exceeds the array.  Larger ragged batches rely on Pallas' partial
    # boundary block for the last tile instead of a full-array jnp.pad pass;
    # garbage rows stay row-local and are dropped from the output below.
    if B < tb:
        x = jnp.pad(x, ((0, tb - B), (0, 0)))

    # One-time casts of the (tiny) resident weights; x stays f32 and is cast
    # to bf16 inside the kernel.
    w1_bf = w1.astype(jnp.bfloat16)
    w2_bf = w2.astype(jnp.bfloat16)
    w3_row = w3.reshape(1, h2dim).astype(jnp.bfloat16)
    b1_row = b1.reshape(1, hidden).astype(jnp.float32)
    b2_row = b2.reshape(1, h2dim).astype(jnp.float32)
    b3_s = b3.reshape(1).astype(jnp.float32)

    out = pl.pallas_call(
        feedforward_kernel,
        out_shape=jax.ShapeDtypeStruct((num_tiles, 1, tb), jnp.float32),
        grid=(num_tiles,),
        in_specs=[
            # x: tiled over batch, pipelined (prefetch next tile under compute).
            pl.BlockSpec((tb, in_features), lambda i: (i, 0)),
            # Weights / biases: constant block index -> VMEM-resident, DMA'd once.
            pl.BlockSpec(w1_bf.shape, lambda i: (0, 0)),
            pl.BlockSpec(b1_row.shape, lambda i: (0, 0)),
            pl.BlockSpec(w2_bf.shape, lambda i: (0, 0)),
            pl.BlockSpec(b2_row.shape, lambda i: (0, 0)),
            pl.BlockSpec(w3_row.shape, lambda i: (0, 0)),
            # Scalar fc3 bias lives in SMEM.
            pl.BlockSpec(memory_space=pltpu.MemorySpace.SMEM),
        ],
        # Lane-dense output row per tile; last two block dims equal full dims.
        out_specs=pl.BlockSpec((1, 1, tb), lambda i: (i, 0, 0)),
        compiler_params=pltpu.CompilerParams(
            dimension_semantics=("parallel",),   # shard batch tiles on v7x 2 TCs
            vmem_limit_bytes=vmem_limit,
        ),
    )(x, w1_bf, b1_row, w2_bf, b2_row, w3_row, b3_s)

    # (num_tiles, 1, tb) -> (B, 1), dropping padded / out-of-range rows.
    return out.reshape(-1)[:B].reshape(B, 1)


def init_params(key, input_size, hidden_size):
    """Deterministic init matching the shapes in Feedforward.__init__."""
    h2 = hidden_size // 2
    k1, k2, k3, k4, k5, k6 = jax.random.split(key, 6)
    w1 = jax.random.normal(k1, (input_size, hidden_size), jnp.float32) * 0.1
    b1 = jax.random.normal(k2, (1, hidden_size), jnp.float32) * 0.1
    w2 = jax.random.normal(k3, (hidden_size, h2), jnp.float32) * 0.1
    b2 = jax.random.normal(k4, (1, h2), jnp.float32) * 0.1
    w3 = jax.random.normal(k5, (h2, 1), jnp.float32) * 0.1
    b3 = jax.random.normal(k6, (1, 1), jnp.float32) * 0.1
    return w1, b1, w2, b2, w3, b3


def feedforward_ref(x, w1, b1, w2, b2, w3, b3):
    """Pure-f32 reference matching the PyTorch module semantics."""
    h = _leaky_relu(x @ w1 + b1)
    h = _leaky_relu(h @ w2 + b2)
    return jax.nn.sigmoid(h @ w3 + b3)


if __name__ == "__main__":
    key = jax.random.PRNGKey(0)
    kx, kp = jax.random.split(key)

    batch, input_size, hidden_size = 8, 16, 32
    x = jax.random.normal(kx, (batch, input_size), jnp.float32)
    params = init_params(kp, input_size, hidden_size)

    ff = jax.jit(lambda x, *p: feedforward(x, *p))
    out = jax.block_until_ready(ff(x, *params))

    ref = feedforward_ref(x, *params)
    assert out.shape == (batch, 1)
    # bf16 MXU operands vs f32 reference -> allow a small tolerance.
    assert jnp.allclose(out, ref, atol=2e-2, rtol=2e-2), (out, ref)
    assert bool(jnp.all(jnp.isfinite(out)))

    print("KERNEL_OK")
</pallas_src>

<mosaic_0001>
module attributes {stable_mosaic.version = 11 : i64} {
  func.func @feedforward_kernel(%arg0: i32, %arg1: memref<128x16xf32, #tpu.memory_space<vmem>>, %arg2: memref<16x32xbf16, #tpu.memory_space<vmem>>, %arg3: memref<1x32xf32, #tpu.memory_space<vmem>>, %arg4: memref<32x16xbf16, #tpu.memory_space<vmem>>, %arg5: memref<1x16xf32, #tpu.memory_space<vmem>>, %arg6: memref<1x16xbf16, #tpu.memory_space<vmem>>, %arg7: memref<1xf32, #tpu.memory_space<smem>>, %arg8: memref<1x1x128xf32, #tpu.memory_space<vmem>>) attributes {dimension_semantics = [#tpu.dimension_semantics<parallel>], iteration_bounds = array<i64: 1>, scalar_prefetch = 0 : i64, scratch_operands = 0 : i64, tpu.core_type = #tpu.core_type<tc>, window_params = [{transform_indices = @transform_0, window_bounds = array<i64: 128, 16>}, {pipeline_mode = #tpu.pipeline_mode<synchronous>, transform_indices = @transform_1, window_bounds = array<i64: 16, 32>}, {pipeline_mode = #tpu.pipeline_mode<synchronous>, transform_indices = @transform_2, window_bounds = array<i64: 1, 32>}, {pipeline_mode = #tpu.pipeline_mode<synchronous>, transform_indices = @transform_3, window_bounds = array<i64: 32, 16>}, {pipeline_mode = #tpu.pipeline_mode<synchronous>, transform_indices = @transform_4, window_bounds = array<i64: 1, 16>}, {pipeline_mode = #tpu.pipeline_mode<synchronous>, transform_indices = @transform_5, window_bounds = array<i64: 1, 16>}, {transform_indices = @transform_6, window_bounds = array<i64: 1>}, {transform_indices = @transform_7, window_bounds = array<i64: 1, 1, 128>}]} {
    %c0 = arith.constant 0 : index
    %c0_0 = arith.constant 0 : index
    %0 = vector.load %arg1[%c0, %c0_0] : memref<128x16xf32, #tpu.memory_space<vmem>>, vector<128x16xf32>
    %1 = arith.truncf %0 : vector<128x16xf32> to vector<128x16xbf16>
    %c0_1 = arith.constant 0 : index
    %c0_2 = arith.constant 0 : index
    %2 = vector.load %arg2[%c0_1, %c0_2] : memref<16x32xbf16, #tpu.memory_space<vmem>>, vector<16x32xbf16>
    %cst = arith.constant dense<0.000000e+00> : vector<128x32xf32>
    %3 = tpu.matmul %1, %2, %cst {dimension_numbers = #tpu.dot_dimension_numbers<[1], [0], [0], [1], [0, 0, 1, 1], [], []>} : vector<128x16xbf16>, vector<16x32xbf16>, vector<128x32xf32> -> vector<128x32xf32>
    %c0_3 = arith.constant 0 : index
    %c0_4 = arith.constant 0 : index
    %4 = vector.load %arg3[%c0_3, %c0_4] : memref<1x32xf32, #tpu.memory_space<vmem>>, vector<1x32xf32>
    %5 = vector.broadcast %4 : vector<1x32xf32> to vector<128x32xf32>
    %6 = arith.addf %3, %5 : vector<128x32xf32>
    %cst_5 = arith.constant 0.000000e+00 : f32
    %7 = vector.broadcast %cst_5 : f32 to vector<128x32xf32>
    %8 = arith.cmpf oge, %6, %7 : vector<128x32xf32>
    %cst_6 = arith.constant 0.00999999977 : f32
    %9 = vector.broadcast %cst_6 : f32 to vector<128x32xf32>
    %10 = arith.mulf %9, %6 : vector<128x32xf32>
    %11 = arith.select %8, %6, %10 : vector<128x32xi1>, vector<128x32xf32>
    %12 = arith.truncf %11 : vector<128x32xf32> to vector<128x32xbf16>
    %c0_7 = arith.constant 0 : index
    %c0_8 = arith.constant 0 : index
    %13 = vector.load %arg4[%c0_7, %c0_8] : memref<32x16xbf16, #tpu.memory_space<vmem>>, vector<32x16xbf16>
    %cst_9 = arith.constant dense<0.000000e+00> : vector<128x16xf32>
    %14 = tpu.matmul %12, %13, %cst_9 {dimension_numbers = #tpu.dot_dimension_numbers<[1], [0], [0], [1], [0, 0, 1, 1], [], []>} : vector<128x32xbf16>, vector<32x16xbf16>, vector<128x16xf32> -> vector<128x16xf32>
    %c0_10 = arith.constant 0 : index
    %c0_11 = arith.constant 0 : index
    %15 = vector.load %arg5[%c0_10, %c0_11] : memref<1x16xf32, #tpu.memory_space<vmem>>, vector<1x16xf32>
    %16 = vector.broadcast %15 : vector<1x16xf32> to vector<128x16xf32>
    %17 = arith.addf %14, %16 : vector<128x16xf32>
    %cst_12 = arith.constant 0.000000e+00 : f32
    %18 = vector.broadcast %cst_12 : f32 to vector<128x16xf32>
    %19 = arith.cmpf oge, %17, %18 : vector<128x16xf32>
    %cst_13 = arith.constant 0.00999999977 : f32
    %20 = vector.broadcast %cst_13 : f32 to vector<128x16xf32>
    %21 = arith.mulf %20, %17 : vector<128x16xf32>
    %22 = arith.select %19, %17, %21 : vector<128x16xi1>, vector<128x16xf32>
    %c0_14 = arith.constant 0 : index
    %c0_15 = arith.constant 0 : index
    %23 = vector.load %arg6[%c0_14, %c0_15] : memref<1x16xbf16, #tpu.memory_space<vmem>>, vector<1x16xbf16>
    %24 = arith.truncf %22 : vector<128x16xf32> to vector<128x16xbf16>
    %cst_16 = arith.constant dense<0.000000e+00> : vector<1x128xf32>
    %25 = tpu.matmul %23, %24, %cst_16 {dimension_numbers = #tpu.dot_dimension_numbers<[1], [1], [0], [0], [0, 0, 1, 0], [], []>} : vector<1x16xbf16>, vector<128x16xbf16>, vector<1x128xf32> -> vector<1x128xf32>
    %c0_17 = arith.constant 0 : index
    %26 = memref.load %arg7[%c0_17] : memref<1xf32, #tpu.memory_space<smem>>
    %27 = vector.broadcast %26 : f32 to vector<1x128xf32>
    %28 = arith.addf %25, %27 : vector<1x128xf32>
    %29 = arith.negf %28 : vector<1x128xf32>
    %30 = math.exp %29 : vector<1x128xf32>
    %cst_18 = arith.constant 1.000000e+00 : f32
    %31 = vector.broadcast %cst_18 : f32 to vector<1x128xf32>
    %32 = arith.addf %31, %30 : vector<1x128xf32>
    %33 = arith.divf %31, %32 : vector<1x128xf32>
    %34 = vector.shape_cast %33 : vector<1x128xf32> to vector<1x1x128xf32>
    %c0_19 = arith.constant 0 : index
    %c0_20 = arith.constant 0 : index
    %c0_21 = arith.constant 0 : index
    %35 = vector.load %arg8[%c0_19, %c0_20, %c0_21] : memref<1x1x128xf32, #tpu.memory_space<vmem>>, vector<1x1x128xf32>
    tpu.vector_store %arg8[%c0_19, %c0_20, %c0_21], %34 {strides = array<i32>} : memref<1x1x128xf32, #tpu.memory_space<vmem>>, vector<1x1x128xf32>,
    return
  }
  func.func @transform_0(%arg0: i32) -> (i32, i32) {
    %c0_i32 = arith.constant 0 : i32
    %c0_i32_0 = arith.constant 0 : i32
    return %arg0, %c0_i32 : i32, i32
  }
  func.func @transform_1(%arg0: i32) -> (i32, i32) {
    %c0_i32 = arith.constant 0 : i32
    %c0_i32_0 = arith.constant 0 : i32
    %c0_i32_1 = arith.constant 0 : i32
    return %c0_i32, %c0_i32_0 : i32, i32
  }
  func.func @transform_2(%arg0: i32) -> (i32, i32) {
    %c0_i32 = arith.constant 0 : i32
    %c0_i32_0 = arith.constant 0 : i32
    %c0_i32_1 = arith.constant 0 : i32
    return %c0_i32, %c0_i32_0 : i32, i32
  }
  func.func @transform_3(%arg0: i32) -> (i32, i32) {
    %c0_i32 = arith.constant 0 : i32
    %c0_i32_0 = arith.constant 0 : i32
    %c0_i32_1 = arith.constant 0 : i32
    return %c0_i32, %c0_i32_0 : i32, i32
  }
  func.func @transform_4(%arg0: i32) -> (i32, i32) {
    %c0_i32 = arith.constant 0 : i32
    %c0_i32_0 = arith.constant 0 : i32
    %c0_i32_1 = arith.constant 0 : i32
    return %c0_i32, %c0_i32_0 : i32, i32
  }
  func.func @transform_5(%arg0: i32) -> (i32, i32) {
    %c0_i32 = arith.constant 0 : i32
    %c0_i32_0 = arith.constant 0 : i32
    %c0_i32_1 = arith.constant 0 : i32
    return %c0_i32, %c0_i32_0 : i32, i32
  }
  func.func @transform_6(%arg0: i32) -> i32 {
    %c0_i32 = arith.constant 0 : i32
    %c0_i32_0 = arith.constant 0 : i32
    return %c0_i32 : i32
  }
  func.func @transform_7(%arg0: i32) -> (i32, i32, i32) {
    %c0_i32 = arith.constant 0 : i32
    %c0_i32_0 = arith.constant 0 : i32
    %c0_i32_1 = arith.constant 0 : i32
    return %arg0, %c0_i32, %c0_i32_0 : i32, i32, i32
  }
}

</mosaic_0001>

<llo_original>
// kernel: _lambda_.1
$region0: #{_lambda_.1}
  #allocation0 [shape = 'u32[]', space=smem, size = 0x4, offset = 0x4, fixed_abs, tag = 'smem constant byte address 0x4 - core index']
  #allocation1 [shape = 'u32[144,128]{1,0:T(1,128)}', space=vmem, size = 0x12000, scoped, tag = 'internal scratch']
  #allocation2 [shape = 'f32[1]{0:T(128)S(6)}', space=smem, size = 0x200, scoped, tag = 'scoped memory for _lambda_.1']
  %s0 = inlined_call_operand.vmem [shape: f32[128,16], index: 0, kind: input, shape index: {}]
  %s1 = inlined_call_operand.vmem [shape: bf16[16,32], index: 1, kind: input, shape index: {}]
  %s2 = inlined_call_operand.vmem [shape: f32[1,32], index: 2, kind: input, shape index: {}]
  %s3 = inlined_call_operand.vmem [shape: bf16[32,16], index: 3, kind: input, shape index: {}]
  %s4 = inlined_call_operand.vmem [shape: f32[1,16], index: 4, kind: input, shape index: {}]
  %s5 = inlined_call_operand.vmem [shape: bf16[1,16], index: 5, kind: input, shape index: {}]
  %s6 = inlined_call_operand.<no memory space> [shape: f32[1], index: 6, kind: input, shape index: {}]
  %s7 = inlined_call_operand.vmem [shape: f32[1,1,128], index: 7, kind: output, shape index: {}]
  %s8 = sld [smem:[#allocation0]]
  $region38: #{_lambda_.1} parent=0
    _
  %s10 = ssub.s32 1, %s8
  %s11 = scalar_select 0, %s10, %s8
  %12 = sst [smem:[#allocation2]] %s6
  // Predicated region
  $region2: #{_lambda_.1} parent=0 // pred_check
    _
  $region3: #{_lambda_.1} parent=0 // pred_check_branch
    %14 = sbr.rel (0) target = $region5
  $region4: #{_lambda_.1} parent=0 // pred_region
    _
  $region5: #{_lambda_.1} parent=0 // pred_fallthru
    _
  // Predicated region
  $region6: #{_lambda_.1} parent=0 // pred_check
    _
  $region7: #{_lambda_.1} parent=0 // pred_check_branch
    %16 = sbr.rel (0) target = $region9
  $region8: #{_lambda_.1} parent=0 // pred_region
    _
  $region9: #{_lambda_.1} parent=0 // pred_fallthru
    _
  // Predicated region
  $region10: #{_lambda_.1} parent=0 // pred_check
    _
  $region11: #{_lambda_.1} parent=0 // pred_check_branch
    %18 = sbr.rel (0) target = $region13
  $region12: #{_lambda_.1} parent=0 // pred_region
    _
  $region13: #{_lambda_.1} parent=0 // pred_fallthru
    _
  // Predicated region
  $region14: #{_lambda_.1} parent=0 // pred_check
    _
  $region15: #{_lambda_.1} parent=0 // pred_check_branch
    %20 = sbr.rel (0) target = $region17
  $region16: #{_lambda_.1} parent=0 // pred_region
    _
  $region17: #{_lambda_.1} parent=0 // pred_fallthru
    _
  // Predicated region
  $region18: #{_lambda_.1} parent=0 // pred_check
    _
  $region19: #{_lambda_.1} parent=0 // pred_check_branch
    %22 = sbr.rel (0) target = $region21
  $region20: #{_lambda_.1} parent=0 // pred_region
    _
  $region21: #{_lambda_.1} parent=0 // pred_fallthru
    _
  // Predicated region
  $region22: #{_lambda_.1} parent=0 // pred_check
    _
  $region23: #{_lambda_.1} parent=0 // pred_check_branch
    %24 = sbr.rel (0) target = $region25
  $region24: #{_lambda_.1} parent=0 // pred_region
    _
  $region25: #{_lambda_.1} parent=0 // pred_fallthru
    _
  // Predicated region
  $region26: #{_lambda_.1} parent=0 // pred_check
    _
  $region27: #{_lambda_.1} parent=0 // pred_check_branch
    %26 = sbr.rel (0) target = $region29
  $region28: #{_lambda_.1} parent=0 // pred_region
    _
  $region29: #{_lambda_.1} parent=0 // pred_fallthru
    _
  %v28 = vld [vmem:[%s0] sm:$0xff]
  %v29 = vld [vmem:[%s0 + $0x8] sm:$0xff]
  %v30 = vld [vmem:[%s0 + $0x10] sm:$0xff]
  %v31 = vld [vmem:[%s0 + $0x18] sm:$0xff]
  %v32 = vld [vmem:[%s0 + $0x20] sm:$0xff]
  %v33 = vld [vmem:[%s0 + $0x28] sm:$0xff]
  %v34 = vld [vmem:[%s0 + $0x30] sm:$0xff]
  %v35 = vld [vmem:[%s0 + $0x38] sm:$0xff]
  %v36 = vld [vmem:[%s0 + $0x40] sm:$0xff]
  %v37 = vld [vmem:[%s0 + $0x48] sm:$0xff]
  %v38 = vld [vmem:[%s0 + $0x50] sm:$0xff]
  %v39 = vld [vmem:[%s0 + $0x58] sm:$0xff]
  %v40 = vld [vmem:[%s0 + $0x60] sm:$0xff]
  %v41 = vld [vmem:[%s0 + $0x68] sm:$0xff]
  %v42 = vld [vmem:[%s0 + $0x70] sm:$0xff]
  %v43 = vld [vmem:[%s0 + $0x78] sm:$0xff]
  %v44 = vpack.c.bf16 %v29, %v28
  %v45 = vpack.c.bf16 %v31, %v30
  %v46 = vpack.c.bf16 %v33, %v32
  %v47 = vpack.c.bf16 %v35, %v34
  %v48 = vpack.c.bf16 %v37, %v36
  %v49 = vpack.c.bf16 %v39, %v38
  %v50 = vpack.c.bf16 %v41, %v40
  %v51 = vpack.c.bf16 %v43, %v42
  %v52 = vld [vmem:[%s1] sm:$0xf]
  %v53 = vld [vmem:[%s1 + $0x4] sm:$0xf]
  %v54 = vld [vmem:[%s2] sm:$0x1]
  %v56 = vlaneseq
  %v57 = vshrl.u32 %v56, 7
  %v58 = vsub.s32 0, %v57
  %v59 = vrot.slane %v54, %v58
  %v63 = vunpack.c.l.b16 %v52
  %v64 = vunpack.c.l.b16 %v53
  %v65 = vpack.c.b16 %v64, %v63
  %vm67 = vcmask 130048
  %v69 = vsel %vm67, %v44, 0
  %v72 = vsel %vm67, %v45, 0
  %v75 = vsel %vm67, %v46, 0
  %v78 = vsel %vm67, %v47, 0
  %v81 = vsel %vm67, %v48, 0
  %v84 = vsel %vm67, %v49, 0
  %v87 = vsel %vm67, %v50, 0
  %v90 = vsel %vm67, %v51, 0
  %92 = vmatprep.subr.bf16.mxu0 0
  %93 = vmatpush1.bf16.msra.mxu0 %v65
  %94 = vmatprep.subr.bf16.mxu0 0
  %95 = vmatpush1.bf16.msra.mxu0 0
  %96 = vmatprep.subr.bf16.mxu0 0
  %97 = vmatpush1.bf16.msra.mxu0 0
  %98 = vmatprep.subr.bf16.mxu0 0
  %99 = vmatpush1.bf16.msra.mxu0 0
  %100 = vmatprep.subr.bf16.mxu0 0
  %101 = vmatpush1.bf16.msra.mxu0 0
  %102 = vmatprep.subr.bf16.mxu0 0
  %103 = vmatpush1.bf16.msra.mxu0 0
  %104 = vmatprep.subr.bf16.mxu0 0
  %105 = vmatpush1.bf16.msra.mxu0 0
  %106 = vmatprep.subr.bf16.mxu0 0
  %107 = vmatpush1.bf16.msra.mxu0 0
  %108 = vmatprep.subr.bf16.mxu0 0
  %109 = vmatpush1.bf16.msra.mxu0 0
  %110 = vmatprep.subr.bf16.mxu0 0
  %111 = vmatpush1.bf16.msra.mxu0 0
  %112 = vmatprep.subr.bf16.mxu0 0
  %113 = vmatpush1.bf16.msra.mxu0 0
  %114 = vmatprep.subr.bf16.mxu0 0
  %115 = vmatpush1.bf16.msra.mxu0 0
  %116 = vmatprep.subr.bf16.mxu0 0
  %117 = vmatpush1.bf16.msra.mxu0 0
  %118 = vmatprep.subr.bf16.mxu0 0
  %119 = vmatpush1.bf16.msra.mxu0 0
  %120 = vmatprep.subr.bf16.mxu0 0
  %121 = vmatpush1.bf16.msra.mxu0 0
  %122 = vmatprep.subr.bf16.mxu0 0
  %123 = vmatpush1.bf16.msra.mxu0 0
  %124 = vmatprep.mubr.bf16.mxu0 0
  %125 = vmatmul.mubr.bf16.gmra.mrb[0].mxu0 %v69
  %v126 = vpop.f32.mrb[0].mxu0
  %v127 = vadd.f32 %v59, %v126
  %v128 = vpop.f32.mrb[0].mxu0
  %v129 = vpop.f32.mrb[0].mxu0
  %v130 = vadd.f32 %v59, %v129
  %v131 = vpop.f32.mrb[0].mxu0
  %132 = vmatprep.mubr.bf16.mxu0 0
  %133 = vmatmul.mubr.bf16.gmra.mrb[0].mxu0 %v72
  %v134 = vpop.f32.mrb[0].mxu0
  %v135 = vadd.f32 %v59, %v134
  %v136 = vpop.f32.mrb[0].mxu0
  %v137 = vpop.f32.mrb[0].mxu0
  %v138 = vadd.f32 %v59, %v137
  %v139 = vpop.f32.mrb[0].mxu0
  %140 = vmatprep.mubr.bf16.mxu0 0
  %141 = vmatmul.mubr.bf16.gmra.mrb[0].mxu0 %v75
  %v142 = vpop.f32.mrb[0].mxu0
  %v143 = vadd.f32 %v59, %v142
  %v144 = vpop.f32.mrb[0].mxu0
  %v145 = vpop.f32.mrb[0].mxu0
  %v146 = vadd.f32 %v59, %v145
  %v147 = vpop.f32.mrb[0].mxu0
  %148 = vmatprep.mubr.bf16.mxu0 0
  %149 = vmatmul.mubr.bf16.gmra.mrb[0].mxu0 %v78
  %v150 = vpop.f32.mrb[0].mxu0
  %v151 = vadd.f32 %v59, %v150
  %v152 = vpop.f32.mrb[0].mxu0
  %v153 = vpop.f32.mrb[0].mxu0
  %v154 = vadd.f32 %v59, %v153
  %v155 = vpop.f32.mrb[0].mxu0
  %156 = vmatprep.mubr.bf16.mxu0 0
  %157 = vmatmul.mubr.bf16.gmra.mrb[0].mxu0 %v81
  %v158 = vpop.f32.mrb[0].mxu0
  %v159 = vadd.f32 %v59, %v158
  %v160 = vpop.f32.mrb[0].mxu0
  %v161 = vpop.f32.mrb[0].mxu0
  %v162 = vadd.f32 %v59, %v161
  %v163 = vpop.f32.mrb[0].mxu0
  %164 = vmatprep.mubr.bf16.mxu0 0
  %165 = vmatmul.mubr.bf16.gmra.mrb[0].mxu0 %v84
  %v166 = vpop.f32.mrb[0].mxu0
  %v167 = vadd.f32 %v59, %v166
  %v168 = vpop.f32.mrb[0].mxu0
  %v169 = vpop.f32.mrb[0].mxu0
  %v170 = vadd.f32 %v59, %v169
  %v171 = vpop.f32.mrb[0].mxu0
  %172 = vmatprep.mubr.bf16.mxu0 0
  %173 = vmatmul.mubr.bf16.gmra.mrb[0].mxu0 %v87
  %v174 = vpop.f32.mrb[0].mxu0
  %v175 = vadd.f32 %v59, %v174
  %v176 = vpop.f32.mrb[0].mxu0
  %v177 = vpop.f32.mrb[0].mxu0
  %v178 = vadd.f32 %v59, %v177
  %v179 = vpop.f32.mrb[0].mxu0
  %180 = vmatprep.mubr.bf16.mxu0 0
  %181 = vmatmul.mubr.bf16.gmra.mrb[0].mxu0 %v90
  %v182 = vpop.f32.mrb[0].mxu0
  %v183 = vadd.f32 %v59, %v182
  %v184 = vpop.f32.mrb[0].mxu0
  %v185 = vpop.f32.mrb[0].mxu0
  %v186 = vadd.f32 %v59, %v185
  %v187 = vpop.f32.mrb[0].mxu0
  %188 = vdwg.mxu0
  %vm189 = vcmp.ge.f32.partialorder %v127, 0.0
  %vm190 = vcmp.ge.f32.partialorder %v130, 0.0
  %vm191 = vcmp.ge.f32.partialorder %v135, 0.0
  %vm192 = vcmp.ge.f32.partialorder %v138, 0.0
  %vm193 = vcmp.ge.f32.partialorder %v143, 0.0
  %vm194 = vcmp.ge.f32.partialorder %v146, 0.0
  %vm195 = vcmp.ge.f32.partialorder %v151, 0.0
  %vm196 = vcmp.ge.f32.partialorder %v154, 0.0
  %vm197 = vcmp.ge.f32.partialorder %v159, 0.0
  %vm198 = vcmp.ge.f32.partialorder %v162, 0.0
  %vm199 = vcmp.ge.f32.partialorder %v167, 0.0
  %vm200 = vcmp.ge.f32.partialorder %v170, 0.0
  %vm201 = vcmp.ge.f32.partialorder %v175, 0.0
  %vm202 = vcmp.ge.f32.partialorder %v178, 0.0
  %vm203 = vcmp.ge.f32.partialorder %v183, 0.0
  %vm204 = vcmp.ge.f32.partialorder %v186, 0.0
  %v205 = vmul.f32 %v127, 0.01
  %v206 = vmul.f32 %v130, 0.01
  %v207 = vmul.f32 %v135, 0.01
  %v208 = vmul.f32 %v138, 0.01
  %v209 = vmul.f32 %v143, 0.01
  %v210 = vmul.f32 %v146, 0.01
  %v211 = vmul.f32 %v151, 0.01
  %v212 = vmul.f32 %v154, 0.01
  %v213 = vmul.f32 %v159, 0.01
  %v214 = vmul.f32 %v162, 0.01
  %v215 = vmul.f32 %v167, 0.01
  %v216 = vmul.f32 %v170, 0.01
  %v217 = vmul.f32 %v175, 0.01
  %v218 = vmul.f32 %v178, 0.01
  %v219 = vmul.f32 %v183, 0.01
  %v220 = vmul.f32 %v186, 0.01
  %v221 = vsel %vm189, %v127, %v205
  %v222 = vsel %vm190, %v130, %v206
  %v223 = vsel %vm191, %v135, %v207
  %v224 = vsel %vm192, %v138, %v208
  %v225 = vsel %vm193, %v143, %v209
  %v226 = vsel %vm194, %v146, %v210
  %v227 = vsel %vm195, %v151, %v211
  %v228 = vsel %vm196, %v154, %v212
  %v229 = vsel %vm197, %v159, %v213
  %v230 = vsel %vm198, %v162, %v214
  %v231 = vsel %vm199, %v167, %v215
  %v232 = vsel %vm200, %v170, %v216
  %v233 = vsel %vm201, %v175, %v217
  %v234 = vsel %vm202, %v178, %v218
  %v235 = vsel %vm203, %v183, %v219
  %v236 = vsel %vm204, %v186, %v220
  %v237 = vpack.c.bf16 %v222, %v221
  %v238 = vpack.c.bf16 %v224, %v223
  %v239 = vpack.c.bf16 %v226, %v225
  %v240 = vpack.c.bf16 %v228, %v227
  %v241 = vpack.c.bf16 %v230, %v229
  %v242 = vpack.c.bf16 %v232, %v231
  %v243 = vpack.c.bf16 %v234, %v233
  %v244 = vpack.c.bf16 %v236, %v235
  %v245 = vld [vmem:[%s3] sm:$0xf]
  %v246 = vld [vmem:[%s3 + $0x4] sm:$0xf]
  %v247 = vld [vmem:[%s3 + $0x8] sm:$0xf]
  %v248 = vld [vmem:[%s3 + $0xc] sm:$0xf]
  %v249 = vld [vmem:[%s4] sm:$0x1]
  %v251 = vlaneseq
  %v252 = vshrl.u32 %v251, 7
  %v253 = vsub.s32 0, %v252
  %v254 = vrot.slane %v249, %v253
  %v260 = vunpack.c.l.b16 %v245
  %v261 = vunpack.c.l.b16 %v246
  %v262 = vunpack.c.l.b16 %v247
  %v263 = vunpack.c.l.b16 %v248
  %v264 = vpack.c.b16 %v261, %v260
  %v265 = vpack.c.b16 %v263, %v262
  %vm268 = vcmask 261120
  %v270 = vsel %vm268, %v237, 0
  %v273 = vsel %vm268, %v238, 0
  %v276 = vsel %vm268, %v239, 0
  %v279 = vsel %vm268, %v240, 0
  %v282 = vsel %vm268, %v241, 0
  %v285 = vsel %vm268, %v242, 0
  %v288 = vsel %vm268, %v243, 0
  %v291 = vsel %vm268, %v244, 0
  %293 = vmatprep.subr.bf16.mxu0 0
  %294 = vmatpush1.bf16.msra.mxu0 %v264
  %295 = vmatprep.subr.bf16.mxu0 0
  %296 = vmatpush1.bf16.msra.mxu0 %v265
  %297 = vmatprep.subr.bf16.mxu0 0
  %298 = vmatpush1.bf16.msra.mxu0 0
  %299 = vmatprep.subr.bf16.mxu0 0
  %300 = vmatpush1.bf16.msra.mxu0 0
  %301 = vmatprep.subr.bf16.mxu0 0
  %302 = vmatpush1.bf16.msra.mxu0 0
  %303 = vmatprep.subr.bf16.mxu0 0
  %304 = vmatpush1.bf16.msra.mxu0 0
  %305 = vmatprep.subr.bf16.mxu0 0
  %306 = vmatpush1.bf16.msra.mxu0 0
  %307 = vmatprep.subr.bf16.mxu0 0
  %308 = vmatpush1.bf16.msra.mxu0 0
  %309 = vmatprep.subr.bf16.mxu0 0
  %310 = vmatpush1.bf16.msra.mxu0 0
  %311 = vmatprep.subr.bf16.mxu0 0
  %312 = vmatpush1.bf16.msra.mxu0 0
  %313 = vmatprep.subr.bf16.mxu0 0
  %314 = vmatpush1.bf16.msra.mxu0 0
  %315 = vmatprep.subr.bf16.mxu0 0
  %316 = vmatpush1.bf16.msra.mxu0 0
  %317 = vmatprep.subr.bf16.mxu0 0
  %318 = vmatpush1.bf16.msra.mxu0 0
  %319 = vmatprep.subr.bf16.mxu0 0
  %320 = vmatpush1.bf16.msra.mxu0 0
  %321 = vmatprep.subr.bf16.mxu0 0
  %322 = vmatpush1.bf16.msra.mxu0 0
  %323 = vmatprep.subr.bf16.mxu0 0
  %324 = vmatpush1.bf16.msra.mxu0 0
  %325 = vmatprep.mubr.bf16.mxu0 0
  %326 = vmatmul.mubr.bf16.gmra.mrb[0].mxu0 %v270
  %v327 = vpop.f32.mrb[0].mxu0
  %v328 = vadd.f32 %v254, %v327
  %v329 = vpop.f32.mrb[0].mxu0
  %v330 = vpop.f32.mrb[0].mxu0
  %v331 = vadd.f32 %v254, %v330
  %v332 = vpop.f32.mrb[0].mxu0
  %333 = vmatprep.mubr.bf16.mxu0 0
  %334 = vmatmul.mubr.bf16.gmra.mrb[0].mxu0 %v273
  %v335 = vpop.f32.mrb[0].mxu0
  %v336 = vadd.f32 %v254, %v335
  %v337 = vpop.f32.mrb[0].mxu0
  %v338 = vpop.f32.mrb[0].mxu0
  %v339 = vadd.f32 %v254, %v338
  %v340 = vpop.f32.mrb[0].mxu0
  %341 = vmatprep.mubr.bf16.mxu0 0
  %342 = vmatmul.mubr.bf16.gmra.mrb[0].mxu0 %v276
  %v343 = vpop.f32.mrb[0].mxu0
  %v344 = vadd.f32 %v254, %v343
  %v345 = vpop.f32.mrb[0].mxu0
  %v346 = vpop.f32.mrb[0].mxu0
  %v347 = vadd.f32 %v254, %v346
  %v348 = vpop.f32.mrb[0].mxu0
  %349 = vmatprep.mubr.bf16.mxu0 0
  %350 = vmatmul.mubr.bf16.gmra.mrb[0].mxu0 %v279
  %v351 = vpop.f32.mrb[0].mxu0
  %v352 = vadd.f32 %v254, %v351
  %v353 = vpop.f32.mrb[0].mxu0
  %v354 = vpop.f32.mrb[0].mxu0
  %v355 = vadd.f32 %v254, %v354
  %v356 = vpop.f32.mrb[0].mxu0
  %357 = vmatprep.mubr.bf16.mxu0 0
  %358 = vmatmul.mubr.bf16.gmra.mrb[0].mxu0 %v282
  %v359 = vpop.f32.mrb[0].mxu0
  %v360 = vadd.f32 %v254, %v359
  %v361 = vpop.f32.mrb[0].mxu0
  %v362 = vpop.f32.mrb[0].mxu0
  %v363 = vadd.f32 %v254, %v362
  %v364 = vpop.f32.mrb[0].mxu0
  %365 = vmatprep.mubr.bf16.mxu0 0
  %366 = vmatmul.mubr.bf16.gmra.mrb[0].mxu0 %v285
  %v367 = vpop.f32.mrb[0].mxu0
  %v368 = vadd.f32 %v254, %v367
  %v369 = vpop.f32.mrb[0].mxu0
  %v370 = vpop.f32.mrb[0].mxu0
  %v371 = vadd.f32 %v254, %v370
  %v372 = vpop.f32.mrb[0].mxu0
  %373 = vmatprep.mubr.bf16.mxu0 0
  %374 = vmatmul.mubr.bf16.gmra.mrb[0].mxu0 %v288
  %v375 = vpop.f32.mrb[0].mxu0
  %v376 = vadd.f32 %v254, %v375
  %v377 = vpop.f32.mrb[0].mxu0
  %v378 = vpop.f32.mrb[0].mxu0
  %v379 = vadd.f32 %v254, %v378
  %v380 = vpop.f32.mrb[0].mxu0
  %381 = vmatprep.mubr.bf16.mxu0 0
  %382 = vmatmul.mubr.bf16.gmra.mrb[0].mxu0 %v291
  %v383 = vpop.f32.mrb[0].mxu0
  %v384 = vadd.f32 %v254, %v383
  %v385 = vpop.f32.mrb[0].mxu0
  %v386 = vpop.f32.mrb[0].mxu0
  %v387 = vadd.f32 %v254, %v386
  %v388 = vpop.f32.mrb[0].mxu0
  %389 = vdwg.mxu0
  %vm390 = vcmp.ge.f32.partialorder %v328, 0.0
  %vm391 = vcmp.ge.f32.partialorder %v331, 0.0
  %vm392 = vcmp.ge.f32.partialorder %v336, 0.0
  %vm393 = vcmp.ge.f32.partialorder %v339, 0.0
  %vm394 = vcmp.ge.f32.partialorder %v344, 0.0
  %vm395 = vcmp.ge.f32.partialorder %v347, 0.0
  %vm396 = vcmp.ge.f32.partialorder %v352, 0.0
  %vm397 = vcmp.ge.f32.partialorder %v355, 0.0
  %vm398 = vcmp.ge.f32.partialorder %v360, 0.0
  %vm399 = vcmp.ge.f32.partialorder %v363, 0.0
  %vm400 = vcmp.ge.f32.partialorder %v368, 0.0
  %vm401 = vcmp.ge.f32.partialorder %v371, 0.0
  %vm402 = vcmp.ge.f32.partialorder %v376, 0.0
  %vm403 = vcmp.ge.f32.partialorder %v379, 0.0
  %vm404 = vcmp.ge.f32.partialorder %v384, 0.0
  %vm405 = vcmp.ge.f32.partialorder %v387, 0.0
  %v406 = vmul.f32 %v328, 0.01
  %v407 = vmul.f32 %v331, 0.01
  %v408 = vmul.f32 %v336, 0.01
  %v409 = vmul.f32 %v339, 0.01
  %v410 = vmul.f32 %v344, 0.01
  %v411 = vmul.f32 %v347, 0.01
  %v412 = vmul.f32 %v352, 0.01
  %v413 = vmul.f32 %v355, 0.01
  %v414 = vmul.f32 %v360, 0.01
  %v415 = vmul.f32 %v363, 0.01
  %v416 = vmul.f32 %v368, 0.01
  %v417 = vmul.f32 %v371, 0.01
  %v418 = vmul.f32 %v376, 0.01
  %v419 = vmul.f32 %v379, 0.01
  %v420 = vmul.f32 %v384, 0.01
  %v421 = vmul.f32 %v387, 0.01
  %v422 = vsel %vm390, %v328, %v406
  %v423 = vsel %vm391, %v331, %v407
  %v424 = vsel %vm392, %v336, %v408
  %v425 = vsel %vm393, %v339, %v409
  %v426 = vsel %vm394, %v344, %v410
  %v427 = vsel %vm395, %v347, %v411
  %v428 = vsel %vm396, %v352, %v412
  %v429 = vsel %vm397, %v355, %v413
  %v430 = vsel %vm398, %v360, %v414
  %v431 = vsel %vm399, %v363, %v415
  %v432 = vsel %vm400, %v368, %v416
  %v433 = vsel %vm401, %v371, %v417
  %v434 = vsel %vm402, %v376, %v418
  %v435 = vsel %vm403, %v379, %v419
  %v436 = vsel %vm404, %v384, %v420
  %v437 = vsel %vm405, %v387, %v421
  %v438 = vld [vmem:[%s5] sm:$0x1]
  %v439 = vpack.c.bf16 %v423, %v422
  %v440 = vpack.c.bf16 %v425, %v424
  %v441 = vpack.c.bf16 %v427, %v426
  %v442 = vpack.c.bf16 %v429, %v428
  %v443 = vpack.c.bf16 %v431, %v430
  %v444 = vpack.c.bf16 %v433, %v432
  %v445 = vpack.c.bf16 %v435, %v434
  %v446 = vpack.c.bf16 %v437, %v436
  %s447 = sld [smem:[#allocation2]]
  %v448 = vstv %s447
  %v450 = vsel %vm67, %v438, 0
  %v453 = vsel %vm67, %v439, 0
  %v456 = vsel %vm67, %v440, 0
  %v459 = vsel %vm67, %v441, 0
  %v462 = vsel %vm67, %v442, 0
  %v465 = vsel %vm67, %v443, 0
  %v468 = vsel %vm67, %v444, 0
  %v471 = vsel %vm67, %v445, 0
  %v474 = vsel %vm67, %v446, 0
  %476 = vmatprep.subr.bf16.mxu0 0
  %477 = vmatpush1.bf16.xpose.msra.mxu0 %v453
  %478 = vmatprep.subr.bf16.mxu0 0
  %479 = vmatpush1.bf16.xpose.msra.mxu0 %v456
  %480 = vmatprep.subr.bf16.mxu0 0
  %481 = vmatpush1.bf16.xpose.msra.mxu0 %v459
  %482 = vmatprep.subr.bf16.mxu0 0
  %483 = vmatpush1.bf16.xpose.msra.mxu0 %v462
  %484 = vmatprep.subr.bf16.mxu0 0
  %485 = vmatpush1.bf16.xpose.msra.mxu0 %v465
  %486 = vmatprep.subr.bf16.mxu0 0
  %487 = vmatpush1.bf16.xpose.msra.mxu0 %v468
  %488 = vmatprep.subr.bf16.mxu0 0
  %489 = vmatpush1.bf16.xpose.msra.mxu0 %v471
  %490 = vmatprep.subr.bf16.mxu0 0
  %491 = vmatpush1.bf16.xpose.msra.mxu0 %v474
  %492 = vmatprep.subr.bf16.mxu0 0
  %493 = vmatpush1.bf16.xpose.msra.mxu0 0
  %494 = vmatprep.subr.bf16.mxu0 0
  %495 = vmatpush1.bf16.xpose.msra.mxu0 0
  %496 = vmatprep.subr.bf16.mxu0 0
  %497 = vmatpush1.bf16.xpose.msra.mxu0 0
  %498 = vmatprep.subr.bf16.mxu0 0
  %499 = vmatpush1.bf16.xpose.msra.mxu0 0
  %500 = vmatprep.subr.bf16.mxu0 0
  %501 = vmatpush1.bf16.xpose.msra.mxu0 0
  %502 = vmatprep.subr.bf16.mxu0 0
  %503 = vmatpush1.bf16.xpose.msra.mxu0 0
  %504 = vmatprep.subr.bf16.mxu0 0
  %505 = vmatpush1.bf16.xpose.msra.mxu0 0
  %506 = vmatprep.subr.bf16.mxu0 0
  %507 = vmatpush1.bf16.xpose.msra.mxu0 0
  %508 = vmatprep.mubr.bf16.mxu0 0
  %509 = vmatmul.mubr.bf16.gmra.mrb[0].mxu0 %v450
  %v510 = vpop.f32.mrb[0].mxu0
  %v511 = vadd.f32 %v448, %v510
  %v512 = vpop.f32.mrb[0].mxu0
  %v513 = vpop.f32.mrb[0].mxu0
  %v514 = vpop.f32.mrb[0].mxu0
  %515 = vdwg.mxu0
  %v516 = vxor.u32 %v511, 2147483648
  %v517 = vmul.f32 %v516, 1.442695
  %v518 = vpow.pop %v517
  %v519 = vadd.f32 %v518, 1.0
  %v520 = vrcp.pop %v519
  %v521 = vmul.f32 1.0, %v520
  %522 = vst [vmem:[%s7] sm:$0x1] %v521
  // Predicated region
  $region30: #{_lambda_.1} parent=0 // pred_check
    _
  $region31: #{_lambda_.1} parent=0 // pred_check_branch
    %524 = sbr.rel (0) target = $region33
  $region32: #{_lambda_.1} parent=0 // pred_region
    _
  $region33: #{_lambda_.1} parent=0 // pred_fallthru
    _
  // Predicated region
  $region34: #{_lambda_.1} parent=0 // pred_check
    _
  $region35: #{_lambda_.1} parent=0 // pred_check_branch
    %526 = sbr.rel (0) target = $region37
  $region36: #{_lambda_.1} parent=0 // pred_region
    _
  $region37: #{_lambda_.1} parent=0 // pred_fallthru
    _

</llo_original>
